<compile_context>
chip_gen: v5e
topology: v5e:2x2
jax: 0.10.0
libtpu: 0.0.40
codegen_flags: <defaults>
</compile_context>

<pallas_src>
import functools

import jax
import jax.numpy as jnp
from jax.experimental import pallas as pl
from jax.experimental.pallas import tpu as pltpu


def _round_up(x, m):
    return (x + m - 1) // m * m


def _elu(x):
    # ELU(alpha=1.0), identical to F.elu.  expm1(x) = tanh(x/2) * (exp(x) + 1)
    # algebraically; this form is precise near 0 (addresses the expm1 concern).
    xn = jnp.minimum(x, 0.0)
    expm1_x = jnp.tanh(0.5 * xn) * (jnp.exp(xn) + 1.0)
    return jnp.where(x > 0, x, expm1_x)


def actor_critic_kernel(state_ref, mask_ref, drop1_ref, drop2_ref,
                        w1_ref, b1_ref, w2_ref, b2_ref, wh_ref, bh_ref,
                        out_ref, *, act_dim):
    # ---- layer 1: Linear -> ELU -> Dropout(0.5) ----
    x = jnp.dot(state_ref[...].astype(jnp.bfloat16), w1_ref[...],
                preferred_element_type=jnp.float32) + b1_ref[...]
    x = _elu(x)
    x = x * drop1_ref[...]                       # mask is 0.0 (dropped) or 2.0 (kept / (1-p))

    # ---- layer 2: Linear -> ELU -> Dropout(0.5) ----
    x = jnp.dot(x.astype(jnp.bfloat16), w2_ref[...],
                preferred_element_type=jnp.float32) + b2_ref[...]
    x = _elu(x)
    x = x * drop2_ref[...]

    # ---- fused actor + critic head (single lane-padded matmul) ----
    head = jnp.dot(x.astype(jnp.bfloat16), wh_ref[...],
                   preferred_element_type=jnp.float32) + bh_ref[...]

    lane = jax.lax.broadcasted_iota(jnp.int32, head.shape, 1)
    is_action = lane < act_dim
    # actor_logits[(1 - act_mask).bool()] = -999999.0 on real action lanes;
    # padding lanes are excluded from the softmax entirely (-inf -> exp == 0),
    # so the softmax is over exactly the act_dim actions, as in PyTorch.
    logits = jnp.where(mask_ref[...] != 0, head, jnp.float32(-999999.0))
    logits = jnp.where(is_action, logits, -jnp.inf)
    m = jnp.max(logits, axis=-1, keepdims=True)
    e = jnp.exp(logits - m)
    denom = jnp.sum(e, axis=-1, keepdims=True)
    probs = e * pl.reciprocal(denom, approx=True)      # divide on the EUP slot

    # Lane-dense output slab: probs in lanes [0, A), critic value at lane A.
    out_ref[...] = jnp.where(lane == act_dim, head, probs)


def pack_params(params, act_dim):
    """Pack params for the kernel: (in, out)-layout bf16 weights, and fuse the
    actor (256 x A) and critic (256 x 1) heads into one lane-padded matmul."""
    A = act_dim
    hp = _round_up(A + 1, 128)
    h2 = params["wa"].shape[0]

    wh = jnp.zeros((h2, hp), jnp.float32)
    wh = wh.at[:, :A].set(params["wa"]).at[:, A].set(params["wc"][:, 0])
    bh = jnp.zeros((1, hp), jnp.float32)
    bh = bh.at[:, :A].set(params["ba"]).at[:, A].set(params["bc"][:, 0])

    return dict(
        w1=params["w1"].astype(jnp.bfloat16), b1=params["b1"],
        w2=params["w2"].astype(jnp.bfloat16), b2=params["b2"],
        wh=wh.astype(jnp.bfloat16), bh=bh,
        act_dim=A, head_pad=hp)


def actor_critic_forward(state, act_mask, packed, *, rng=None, training=True,
                         block_b=512):
    """state: (B, state_dim) f32, act_mask: (B, act_dim) int (0/1).
    Returns (act_probs (B, A) f32, state_values (B, 1) f32)."""
    B, S = state.shape
    A, HP = packed["act_dim"], packed["head_pad"]
    H1 = packed["w1"].shape[1]
    H2 = packed["w2"].shape[1]

    bt = min(_round_up(B, 8), block_b)       # batch tile (multiple of 8 sublanes)
    Bp = _round_up(B, bt)
    grid = (Bp // bt,)

    # Pad batch to the tile size (padded rows are discarded by the wrapper).
    statep = jnp.zeros((Bp, S), jnp.float32).at[:B].set(state.astype(jnp.float32))
    maskp = jnp.zeros((Bp, HP), jnp.int32).at[:B, :A].set(act_mask.astype(jnp.int32))

    # Dropout scale planes (p = 0.5): 0.0 = dropped, 2.0 = kept * 1/(1-p).
    if training:
        if rng is None:
            rng = jax.random.PRNGKey(0)
        k1, k2 = jax.random.split(rng)
        d1 = jax.random.bernoulli(k1, 0.5, (Bp, H1)).astype(jnp.float32) * 2.0
        d2 = jax.random.bernoulli(k2, 0.5, (Bp, H2)).astype(jnp.float32) * 2.0
    else:
        d1 = jnp.ones((Bp, H1), jnp.float32)
        d2 = jnp.ones((Bp, H2), jnp.float32)

    row = lambda bs: pl.BlockSpec(bs, lambda i: (i, 0))   # batch-tiled operands
    rep = lambda bs: pl.BlockSpec(bs, lambda i: (0, 0))   # weights: VMEM-resident

    kernel = functools.partial(actor_critic_kernel, act_dim=A)
    out = pl.pallas_call(
        kernel,
        grid=grid,
        out_shape=jax.ShapeDtypeStruct((Bp, HP), jnp.float32),
        in_specs=[row((bt, S)), row((bt, HP)), row((bt, H1)), row((bt, H2)),
                  rep((S, H1)), rep((1, H1)),
                  rep((H1, H2)), rep((1, H2)),
                  rep((H2, HP)), rep((1, HP))],
        out_specs=row((bt, HP)),
        compiler_params=pltpu.CompilerParams(
            dimension_semantics=("parallel",)),
    )(statep, maskp, d1, d2,
      packed["w1"], packed["b1"], packed["w2"], packed["b2"],
      packed["wh"], packed["bh"])

    probs = out[:B, :A]
    values = out[:B, A:A + 1]
    return probs, values


def init_params(key, state_dim, act_dim, hidden_sizes=(512, 256)):
    """Deterministic init mimicking nn.Linear's U(-1/sqrt(fan_in), 1/sqrt(fan_in)),
    stored in (in, out) layout (the transpose of torch's (out, in) weight)."""
    def linear(k, fan_in, fan_out):
        kw, kb = jax.random.split(k)
        bound = float(fan_in) ** -0.5
        w = jax.random.uniform(kw, (fan_in, fan_out), jnp.float32, -bound, bound)
        b = jax.random.uniform(kb, (1, fan_out), jnp.float32, -bound, bound)
        return w, b

    k1, k2, k3, k4 = jax.random.split(key, 4)
    w1, b1 = linear(k1, state_dim, hidden_sizes[0])
    w2, b2 = linear(k2, hidden_sizes[0], hidden_sizes[1])
    wa, ba = linear(k3, hidden_sizes[1], act_dim)
    wc, bc = linear(k4, hidden_sizes[1], 1)
    return dict(w1=w1, b1=b1, w2=w2, b2=b2, wa=wa, ba=ba, wc=wc, bc=bc)


if __name__ == "__main__":
    # Small shapes consistent with the module: batch=8, state_dim=32, act_dim=16,
    # hidden_sizes=[512, 256] (the module's defaults).
    B, STATE_DIM, ACT_DIM = 8, 32, 16
    HIDDEN = (512, 256)

    root = jax.random.PRNGKey(0)
    kp, ks, km, kd = jax.random.split(root, 4)

    params = init_params(kp, STATE_DIM, ACT_DIM, HIDDEN)
    packed = pack_params(params, ACT_DIM)

    state = jax.random.normal(ks, (B, STATE_DIM), dtype=jnp.float32)
    act_mask = jax.random.bernoulli(km, 0.6, (B, ACT_DIM)).astype(jnp.int32)
    act_mask = act_mask.at[:, 0].set(1)  # ensure at least one valid action per row

    probs, values = actor_critic_forward(state, act_mask, packed,
                                         rng=kd, training=True)
    probs = jax.block_until_ready(probs)
    values = jax.block_until_ready(values)

    assert probs.shape == (B, ACT_DIM) and values.shape == (B, 1)
    assert bool(jnp.all(jnp.isfinite(probs))) and bool(jnp.all(jnp.isfinite(values)))
    # rows of act_probs sum to ~1 (approx-reciprocal softmax denominator -> loose tol)
    assert bool(jnp.allclose(jnp.sum(probs, axis=-1), 1.0, atol=2e-2))
    # masked actions get ~zero probability
    assert bool(jnp.all(jnp.where(act_mask == 0, probs, 0.0) < 1e-6))

    print("KERNEL_OK")
</pallas_src>

<mosaic_0001>
module attributes {stable_mosaic.version = 11 : i64} {
  func.func @actor_critic_kernel(%arg0: i32, %arg1: memref<8x32xf32, #tpu.memory_space<vmem>>, %arg2: memref<8x128xi32, #tpu.memory_space<vmem>>, %arg3: memref<8x512xf32, #tpu.memory_space<vmem>>, %arg4: memref<8x256xf32, #tpu.memory_space<vmem>>, %arg5: memref<32x512xbf16, #tpu.memory_space<vmem>>, %arg6: memref<1x512xf32, #tpu.memory_space<vmem>>, %arg7: memref<512x256xbf16, #tpu.memory_space<vmem>>, %arg8: memref<1x256xf32, #tpu.memory_space<vmem>>, %arg9: memref<256x128xbf16, #tpu.memory_space<vmem>>, %arg10: memref<1x128xf32, #tpu.memory_space<vmem>>, %arg11: memref<8x128xf32, #tpu.memory_space<vmem>>) attributes {dimension_semantics = [#tpu.dimension_semantics<parallel>], iteration_bounds = array<i64: 1>, scalar_prefetch = 0 : i64, scratch_operands = 0 : i64, tpu.core_type = #tpu.core_type<tc>, window_params = [{transform_indices = @transform_0, window_bounds = array<i64: 8, 32>}, {transform_indices = @transform_1, window_bounds = array<i64: 8, 128>}, {transform_indices = @transform_2, window_bounds = array<i64: 8, 512>}, {transform_indices = @transform_3, window_bounds = array<i64: 8, 256>}, {pipeline_mode = #tpu.pipeline_mode<synchronous>, transform_indices = @transform_4, window_bounds = array<i64: 32, 512>}, {pipeline_mode = #tpu.pipeline_mode<synchronous>, transform_indices = @transform_5, window_bounds = array<i64: 1, 512>}, {pipeline_mode = #tpu.pipeline_mode<synchronous>, transform_indices = @transform_6, window_bounds = array<i64: 512, 256>}, {pipeline_mode = #tpu.pipeline_mode<synchronous>, transform_indices = @transform_7, window_bounds = array<i64: 1, 256>}, {pipeline_mode = #tpu.pipeline_mode<synchronous>, transform_indices = @transform_8, window_bounds = array<i64: 256, 128>}, {pipeline_mode = #tpu.pipeline_mode<synchronous>, transform_indices = @transform_9, window_bounds = array<i64: 1, 128>}, {transform_indices = @transform_10, window_bounds = array<i64: 8, 128>}]} {
    %c0 = arith.constant 0 : index
    %c0_0 = arith.constant 0 : index
    %0 = vector.load %arg1[%c0, %c0_0] : memref<8x32xf32, #tpu.memory_space<vmem>>, vector<8x32xf32>
    %1 = arith.truncf %0 : vector<8x32xf32> to vector<8x32xbf16>
    %c0_1 = arith.constant 0 : index
    %c0_2 = arith.constant 0 : index
    %2 = vector.load %arg5[%c0_1, %c0_2] : memref<32x512xbf16, #tpu.memory_space<vmem>>, vector<32x512xbf16>
    %cst = arith.constant dense<0.000000e+00> : vector<8x512xf32>
    %3 = tpu.matmul %1, %2, %cst {dimension_numbers = #tpu.dot_dimension_numbers<[1], [0], [0], [1], [0, 0, 1, 1], [], []>} : vector<8x32xbf16>, vector<32x512xbf16>, vector<8x512xf32> -> vector<8x512xf32>
    %c0_3 = arith.constant 0 : index
    %c0_4 = arith.constant 0 : index
    %4 = vector.load %arg6[%c0_3, %c0_4] : memref<1x512xf32, #tpu.memory_space<vmem>>, vector<1x512xf32>
    %5 = vector.broadcast %4 : vector<1x512xf32> to vector<8x512xf32>
    %6 = arith.addf %3, %5 : vector<8x512xf32>
    %cst_5 = arith.constant 0.000000e+00 : f32
    %7 = vector.broadcast %cst_5 : f32 to vector<8x512xf32>
    %8 = arith.minimumf %6, %7 : vector<8x512xf32>
    %cst_6 = arith.constant 5.000000e-01 : f32
    %9 = vector.broadcast %cst_6 : f32 to vector<8x512xf32>
    %10 = arith.mulf %9, %8 : vector<8x512xf32>
    %11 = math.tanh %10 : vector<8x512xf32>
    %12 = math.exp %8 : vector<8x512xf32>
    %cst_7 = arith.constant 1.000000e+00 : f32
    %13 = vector.broadcast %cst_7 : f32 to vector<8x512xf32>
    %14 = arith.addf %12, %13 : vector<8x512xf32>
    %15 = arith.mulf %11, %14 : vector<8x512xf32>
    %cst_8 = arith.constant 0.000000e+00 : f32
    %16 = vector.broadcast %cst_8 : f32 to vector<8x512xf32>
    %17 = arith.cmpf ogt, %6, %16 : vector<8x512xf32>
    %18 = arith.select %17, %6, %15 : vector<8x512xi1>, vector<8x512xf32>
    %c0_9 = arith.constant 0 : index
    %c0_10 = arith.constant 0 : index
    %19 = vector.load %arg3[%c0_9, %c0_10] : memref<8x512xf32, #tpu.memory_space<vmem>>, vector<8x512xf32>
    %20 = arith.mulf %18, %19 : vector<8x512xf32>
    %21 = arith.truncf %20 : vector<8x512xf32> to vector<8x512xbf16>
    %c0_11 = arith.constant 0 : index
    %c0_12 = arith.constant 0 : index
    %22 = vector.load %arg7[%c0_11, %c0_12] : memref<512x256xbf16, #tpu.memory_space<vmem>>, vector<512x256xbf16>
    %cst_13 = arith.constant dense<0.000000e+00> : vector<8x256xf32>
    %23 = tpu.matmul %21, %22, %cst_13 {dimension_numbers = #tpu.dot_dimension_numbers<[1], [0], [0], [1], [0, 0, 1, 1], [], []>} : vector<8x512xbf16>, vector<512x256xbf16>, vector<8x256xf32> -> vector<8x256xf32>
    %c0_14 = arith.constant 0 : index
    %c0_15 = arith.constant 0 : index
    %24 = vector.load %arg8[%c0_14, %c0_15] : memref<1x256xf32, #tpu.memory_space<vmem>>, vector<1x256xf32>
    %25 = vector.broadcast %24 : vector<1x256xf32> to vector<8x256xf32>
    %26 = arith.addf %23, %25 : vector<8x256xf32>
    %cst_16 = arith.constant 0.000000e+00 : f32
    %27 = vector.broadcast %cst_16 : f32 to vector<8x256xf32>
    %28 = arith.minimumf %26, %27 : vector<8x256xf32>
    %cst_17 = arith.constant 5.000000e-01 : f32
    %29 = vector.broadcast %cst_17 : f32 to vector<8x256xf32>
    %30 = arith.mulf %29, %28 : vector<8x256xf32>
    %31 = math.tanh %30 : vector<8x256xf32>
    %32 = math.exp %28 : vector<8x256xf32>
    %cst_18 = arith.constant 1.000000e+00 : f32
    %33 = vector.broadcast %cst_18 : f32 to vector<8x256xf32>
    %34 = arith.addf %32, %33 : vector<8x256xf32>
    %35 = arith.mulf %31, %34 : vector<8x256xf32>
    %cst_19 = arith.constant 0.000000e+00 : f32
    %36 = vector.broadcast %cst_19 : f32 to vector<8x256xf32>
    %37 = arith.cmpf ogt, %26, %36 : vector<8x256xf32>
    %38 = arith.select %37, %26, %35 : vector<8x256xi1>, vector<8x256xf32>
    %c0_20 = arith.constant 0 : index
    %c0_21 = arith.constant 0 : index
    %39 = vector.load %arg4[%c0_20, %c0_21] : memref<8x256xf32, #tpu.memory_space<vmem>>, vector<8x256xf32>
    %40 = arith.mulf %38, %39 : vector<8x256xf32>
    %41 = arith.truncf %40 : vector<8x256xf32> to vector<8x256xbf16>
    %c0_22 = arith.constant 0 : index
    %c0_23 = arith.constant 0 : index
    %42 = vector.load %arg9[%c0_22, %c0_23] : memref<256x128xbf16, #tpu.memory_space<vmem>>, vector<256x128xbf16>
    %cst_24 = arith.constant dense<0.000000e+00> : vector<8x128xf32>
    %43 = tpu.matmul %41, %42, %cst_24 {dimension_numbers = #tpu.dot_dimension_numbers<[1], [0], [0], [1], [0, 0, 1, 1], [], []>} : vector<8x256xbf16>, vector<256x128xbf16>, vector<8x128xf32> -> vector<8x128xf32>
    %c0_25 = arith.constant 0 : index
    %c0_26 = arith.constant 0 : index
    %44 = vector.load %arg10[%c0_25, %c0_26] : memref<1x128xf32, #tpu.memory_space<vmem>>, vector<1x128xf32>
    %45 = vector.broadcast %44 : vector<1x128xf32> to vector<8x128xf32>
    %46 = arith.addf %43, %45 : vector<8x128xf32>
    %47 = tpu.iota {dimensions = array<i32: 1>} : vector<8x128xi32>
    %c16_i32 = arith.constant 16 : i32
    %48 = vector.broadcast %c16_i32 : i32 to vector<8x128xi32>
    %49 = arith.cmpi slt, %47, %48 : vector<8x128xi32>
    %c0_27 = arith.constant 0 : index
    %c0_28 = arith.constant 0 : index
    %50 = vector.load %arg2[%c0_27, %c0_28] : memref<8x128xi32, #tpu.memory_space<vmem>>, vector<8x128xi32>
    %c0_i32 = arith.constant 0 : i32
    %51 = vector.broadcast %c0_i32 : i32 to vector<8x128xi32>
    %52 = arith.cmpi ne, %50, %51 : vector<8x128xi32>
    %cst_29 = arith.constant -9.999990e+05 : f32
    %53 = vector.broadcast %cst_29 : f32 to vector<8x128xf32>
    %54 = arith.select %52, %46, %53 : vector<8x128xi1>, vector<8x128xf32>
    %cst_30 = arith.constant 0xFF800000 : f32
    %55 = vector.broadcast %cst_30 : f32 to vector<8x128xf32>
    %56 = arith.select %49, %54, %55 : vector<8x128xi1>, vector<8x128xf32>
    %cst_31 = arith.constant dense<0xFF800000> : vector<8xf32>
    %57 = vector.multi_reduction <maximumf>, %56, %cst_31 [1] : vector<8x128xf32> to vector<8xf32>
    %58 = vector.shape_cast %57 : vector<8xf32> to vector<8x1xf32>
    %59 = vector.broadcast %58 : vector<8x1xf32> to vector<8x128xf32>
    %60 = arith.subf %56, %59 : vector<8x128xf32>
    %61 = math.exp %60 : vector<8x128xf32>
    %cst_32 = arith.constant dense<0.000000e+00> : vector<8xf32>
    %62 = vector.multi_reduction <add>, %61, %cst_32 [1] : vector<8x128xf32> to vector<8xf32>
    %63 = vector.shape_cast %62 : vector<8xf32> to vector<8x1xf32>
    %64 = tpu.reciprocal %63 {approx = true} : vector<8x1xf32> -> vector<8x1xf32>
    %65 = vector.broadcast %64 : vector<8x1xf32> to vector<8x128xf32>
    %66 = arith.mulf %61, %65 : vector<8x128xf32>
    %c16_i32_33 = arith.constant 16 : i32
    %67 = vector.broadcast %c16_i32_33 : i32 to vector<8x128xi32>
    %68 = arith.cmpi eq, %47, %67 : vector<8x128xi32>
    %69 = arith.select %68, %46, %66 : vector<8x128xi1>, vector<8x128xf32>
    %c0_34 = arith.constant 0 : index
    %c0_35 = arith.constant 0 : index
    %70 = vector.load %arg11[%c0_34, %c0_35] : memref<8x128xf32, #tpu.memory_space<vmem>>, vector<8x128xf32>
    tpu.vector_store %arg11[%c0_34, %c0_35], %69 {strides = array<i32>} : memref<8x128xf32, #tpu.memory_space<vmem>>, vector<8x128xf32>,
    return
  }
  func.func @transform_0(%arg0: i32) -> (i32, i32) {
    %c0_i32 = arith.constant 0 : i32
    %c0_i32_0 = arith.constant 0 : i32
    return %arg0, %c0_i32 : i32, i32
  }
  func.func @transform_1(%arg0: i32) -> (i32, i32) {
    %c0_i32 = arith.constant 0 : i32
    %c0_i32_0 = arith.constant 0 : i32
    return %arg0, %c0_i32 : i32, i32
  }
  func.func @transform_2(%arg0: i32) -> (i32, i32) {
    %c0_i32 = arith.constant 0 : i32
    %c0_i32_0 = arith.constant 0 : i32
    return %arg0, %c0_i32 : i32, i32
  }
  func.func @transform_3(%arg0: i32) -> (i32, i32) {
    %c0_i32 = arith.constant 0 : i32
    %c0_i32_0 = arith.constant 0 : i32
    return %arg0, %c0_i32 : i32, i32
  }
  func.func @transform_4(%arg0: i32) -> (i32, i32) {
    %c0_i32 = arith.constant 0 : i32
    %c0_i32_0 = arith.constant 0 : i32
    %c0_i32_1 = arith.constant 0 : i32
    return %c0_i32, %c0_i32_0 : i32, i32
  }
  func.func @transform_5(%arg0: i32) -> (i32, i32) {
    %c0_i32 = arith.constant 0 : i32
    %c0_i32_0 = arith.constant 0 : i32
    %c0_i32_1 = arith.constant 0 : i32
    return %c0_i32, %c0_i32_0 : i32, i32
  }
  func.func @transform_6(%arg0: i32) -> (i32, i32) {
    %c0_i32 = arith.constant 0 : i32
    %c0_i32_0 = arith.constant 0 : i32
    %c0_i32_1 = arith.constant 0 : i32
    return %c0_i32, %c0_i32_0 : i32, i32
  }
  func.func @transform_7(%arg0: i32) -> (i32, i32) {
    %c0_i32 = arith.constant 0 : i32
    %c0_i32_0 = arith.constant 0 : i32
    %c0_i32_1 = arith.constant 0 : i32
    return %c0_i32, %c0_i32_0 : i32, i32
  }
  func.func @transform_8(%arg0: i32) -> (i32, i32) {
    %c0_i32 = arith.constant 0 : i32
    %c0_i32_0 = arith.constant 0 : i32
    %c0_i32_1 = arith.constant 0 : i32
    return %c0_i32, %c0_i32_0 : i32, i32
  }
  func.func @transform_9(%arg0: i32) -> (i32, i32) {
    %c0_i32 = arith.constant 0 : i32
    %c0_i32_0 = arith.constant 0 : i32
    %c0_i32_1 = arith.constant 0 : i32
    return %c0_i32, %c0_i32_0 : i32, i32
  }
  func.func @transform_10(%arg0: i32) -> (i32, i32) {
    %c0_i32 = arith.constant 0 : i32
    %c0_i32_0 = arith.constant 0 : i32
    return %arg0, %c0_i32 : i32, i32
  }
}

</mosaic_0001>

<llo_original>
// kernel: tpu_custom_call.1
$region0: #{tpu_custom_call.1}
  #allocation0 [shape = 'u32[]', space=smem, size = 0x4, offset = 0x4, fixed_abs, tag = 'smem constant byte address 0x4 - core index']
  #allocation1 [shape = 'u32[72,128]{1,0:T(1,128)}', space=vmem, size = 0x9000, scoped, tag = 'internal scratch']
  %s0 = inlined_call_operand.hbm [shape: f32[8,32], index: 0, kind: input, shape index: {}]
  %s1 = inlined_call_operand.hbm [shape: s32[8,128], index: 1, kind: input, shape index: {}]
  %s2 = inlined_call_operand.hbm [shape: f32[8,512], index: 2, kind: input, shape index: {}]
  %s3 = inlined_call_operand.hbm [shape: f32[8,256], index: 3, kind: input, shape index: {}]
  %s4 = inlined_call_operand.hbm [shape: bf16[32,512], index: 4, kind: input, shape index: {}]
  %s5 = inlined_call_operand.vmem [shape: f32[1,512], index: 5, kind: input, shape index: {}]
  %s6 = inlined_call_operand.hbm [shape: bf16[512,256], index: 6, kind: input, shape index: {}]
  %s7 = inlined_call_operand.vmem [shape: f32[1,256], index: 7, kind: input, shape index: {}]
  %s8 = inlined_call_operand.hbm [shape: bf16[256,128], index: 8, kind: input, shape index: {}]
  %s9 = inlined_call_operand.vmem [shape: f32[1,128], index: 9, kind: input, shape index: {}]
  %s10 = inlined_call_operand.hbm [shape: f32[8,128], index: 10, kind: output, shape index: {}]
  %s11 = sld [smem:[#allocation0]]
  $region78: #{tpu_custom_call.1} parent=0
    _
  %s13 = ssub.s32 1, %s11
  %s14 = scalar_select 0, %s13, %s11
  $region1: #{tpu_custom_call.1} parent=0
    #allocation2 [shape = 'u8[4096]{0}', space=vmem, size = 0x1000, scoped, tag = 'input window, operand 0, single buffered']
    #allocation3 [shape = 's32[1]{0}', space=sflag, size = 0x4, scoped, tag = 'scoped memory for tpu_custom_call.1']
    #allocation4 [shape = 's32[1]{0}', space=sflag, size = 0x4, scoped, tag = 'scoped memory for tpu_custom_call.1']
    #allocation5 [shape = 'u8[4096]{0}', space=vmem, size = 0x1000, scoped, tag = 'input window, operand 1, single buffered']
    #allocation6 [shape = 's32[1]{0}', space=sflag, size = 0x4, scoped, tag = 'scoped memory for tpu_custom_call.1']
    #allocation7 [shape = 'u8[16384]{0}', space=vmem, size = 0x4000, scoped, tag = 'input window, operand 2, single buffered']
    #allocation8 [shape = 'u8[8192]{0}', space=vmem, size = 0x2000, scoped, tag = 'input window, operand 3, single buffered']
    #allocation9 [shape = 's32[1]{0}', space=sflag, size = 0x4, scoped, tag = 'scoped memory for tpu_custom_call.1']
    #allocation10 [shape = 'u8[32768]{0}', space=vmem, size = 0x8000, scoped, tag = 'input window, operand 4, single buffered']
    #allocation11 [shape = 'u8[262144]{0}', space=vmem, size = 0x40000, scoped, tag = 'input window, operand 6, single buffered']
    #allocation12 [shape = 's32[1]{0}', space=sflag, size = 0x4, scoped, tag = 'scoped memory for tpu_custom_call.1']
    #allocation13 [shape = 'u8[65536]{0}', space=vmem, size = 0x10000, scoped, tag = 'input window, operand 8, single buffered']
    #allocation14 [shape = 'u8[4096]{0}', space=vmem, size = 0x1000, scoped, tag = 'output window, operand 0, single buffered']
    %15 = vsyncpa [#allocation3], 0
    %16 = vsyncpa [#allocation6], 0
    %17 = vsyncpa [#allocation9], 0
    %18 = vsyncpa [#allocation12], 0
    %19 = vsyncpa [#allocation4], 0
    // Predicated region
    $region2: #{tpu_custom_call.1} parent=1 // pred_check
      _
    $region3: #{tpu_custom_call.1} parent=1 // pred_check_branch
      %21 = sbr.rel (0) target = $region5
    $region4: #{tpu_custom_call.1} parent=1 // pred_region
      %23 = vsyncadd [#allocation3], 0
      %s25 = sshll.u32 %s0, 4
      %s26 = int_to_ptr.hbm [resolvable:$true] %s25
      %s27 = sshll.u32 [#allocation2], 4
      %s28 = int_to_ptr.vmem [resolvable:$true] %s27
      %30 = dma.hbm_to_vmem [thread:$0]  %s26, 128, %s28, [#allocation3]
    $region5: #{tpu_custom_call.1} parent=1 // pred_fallthru
      _
    // Predicated region
    $region6: #{tpu_custom_call.1} parent=1 // pred_check
      _
    $region7: #{tpu_custom_call.1} parent=1 // pred_check_branch
      %32 = sbr.rel (0) target = $region9
    $region8: #{tpu_custom_call.1} parent=1 // pred_region
      %34 = vsyncadd [#allocation6], 0
      %s36 = sshll.u32 %s1, 4
      %s37 = int_to_ptr.hbm [resolvable:$true] %s36
      %s38 = sshll.u32 [#allocation5], 4
      %s39 = int_to_ptr.vmem [resolvable:$true] %s38
      %41 = dma.hbm_to_vmem [thread:$0]  %s37, 128, %s39, [#allocation6]
    $region9: #{tpu_custom_call.1} parent=1 // pred_fallthru
      _
    // Predicated region
    $region10: #{tpu_custom_call.1} parent=1 // pred_check
      _
    $region11: #{tpu_custom_call.1} parent=1 // pred_check_branch
      %43 = sbr.rel (0) target = $region13
    $region12: #{tpu_custom_call.1} parent=1 // pred_region
      %45 = vsyncadd [#allocation6], 0
      %s47 = sshll.u32 %s2, 4
      %s48 = int_to_ptr.hbm [resolvable:$true] %s47
      %s49 = sshll.u32 [#allocation7], 4
      %s50 = int_to_ptr.vmem [resolvable:$true] %s49
      %52 = dma.hbm_to_vmem [thread:$0]  %s48, 512, %s50, [#allocation6]
    $region13: #{tpu_custom_call.1} parent=1 // pred_fallthru
      _
    // Predicated region
    $region14: #{tpu_custom_call.1} parent=1 // pred_check
      _
    $region15: #{tpu_custom_call.1} parent=1 // pred_check_branch
      %54 = sbr.rel (0) target = $region17
    $region16: #{tpu_custom_call.1} parent=1 // pred_region
      %56 = vsyncadd [#allocation9], 0
      %s58 = sshll.u32 %s3, 4
      %s59 = int_to_ptr.hbm [resolvable:$true] %s58
      %s60 = sshll.u32 [#allocation8], 4
      %s61 = int_to_ptr.vmem [resolvable:$true] %s60
      %63 = dma.hbm_to_vmem [thread:$0]  %s59, 256, %s61, [#allocation9]
    $region17: #{tpu_custom_call.1} parent=1 // pred_fallthru
      _
    // Predicated region
    $region18: #{tpu_custom_call.1} parent=1 // pred_check
      _
    $region19: #{tpu_custom_call.1} parent=1 // pred_check_branch
      %65 = sbr.rel (0) target = $region21
    $region20: #{tpu_custom_call.1} parent=1 // pred_region
      %67 = vsyncadd [#allocation9], 0
      %s68 = sshll.u32 %s4, 4
      %s69 = int_to_ptr.hbm [resolvable:$true] %s68
      %s70 = sshll.u32 [#allocation10], 4
      %s71 = int_to_ptr.vmem [resolvable:$true] %s70
      %76 = dma.hbm_to_vmem [thread:$0]  %s69, 1024, %s71, [#allocation9], 256, 256, 16
    $region21: #{tpu_custom_call.1} parent=1 // pred_fallthru
      _
    // Predicated region
    $region22: #{tpu_custom_call.1} parent=1 // pred_check
      _
    $region23: #{tpu_custom_call.1} parent=1 // pred_check_branch
      %78 = sbr.rel (0) target = $region25
    $region24: #{tpu_custom_call.1} parent=1 // pred_region
      _
    $region25: #{tpu_custom_call.1} parent=1 // pred_fallthru
      _
    // Predicated region
    $region26: #{tpu_custom_call.1} parent=1 // pred_check
      _
    $region27: #{tpu_custom_call.1} parent=1 // pred_check_branch
      %80 = sbr.rel (0) target = $region29
    $region28: #{tpu_custom_call.1} parent=1 // pred_region
      %82 = vsyncadd [#allocation12], 0
      %s83 = sshll.u32 %s6, 4
      %s84 = int_to_ptr.hbm [resolvable:$true] %s83
      %s85 = sshll.u32 [#allocation11], 4
      %s86 = int_to_ptr.vmem [resolvable:$true] %s85
      %91 = dma.hbm_to_vmem [thread:$0]  %s84, 8192, %s86, [#allocation12], 128, 128, 8
    $region29: #{tpu_custom_call.1} parent=1 // pred_fallthru
      _
    // Predicated region
    $region30: #{tpu_custom_call.1} parent=1 // pred_check
      _
    $region31: #{tpu_custom_call.1} parent=1 // pred_check_branch
      %93 = sbr.rel (0) target = $region33
    $region32: #{tpu_custom_call.1} parent=1 // pred_region
      _
    $region33: #{tpu_custom_call.1} parent=1 // pred_fallthru
      _
    // Predicated region
    $region34: #{tpu_custom_call.1} parent=1 // pred_check
      _
    $region35: #{tpu_custom_call.1} parent=1 // pred_check_branch
      %95 = sbr.rel (0) target = $region37
    $region36: #{tpu_custom_call.1} parent=1 // pred_region
      %97 = vsyncadd [#allocation12], 0
      %s98 = sshll.u32 %s8, 4
      %s99 = int_to_ptr.hbm [resolvable:$true] %s98
      %s100 = sshll.u32 [#allocation13], 4
      %s101 = int_to_ptr.vmem [resolvable:$true] %s100
      %106 = dma.hbm_to_vmem [thread:$0]  %s99, 2048, %s101, [#allocation12], 64, 64, 4
    $region37: #{tpu_custom_call.1} parent=1 // pred_fallthru
      _
    // Predicated region
    $region38: #{tpu_custom_call.1} parent=1 // pred_check
      _
    $region39: #{tpu_custom_call.1} parent=1 // pred_check_branch
      %108 = sbr.rel (0) target = $region41
    $region40: #{tpu_custom_call.1} parent=1 // pred_region
      _
    $region41: #{tpu_custom_call.1} parent=1 // pred_fallthru
      _
    // Predicated region
    $region42: #{tpu_custom_call.1} parent=1 // pred_check
      _
    $region43: #{tpu_custom_call.1} parent=1 // pred_check_branch
      %110 = sbr.rel (0) target = $region45
    $region44: #{tpu_custom_call.1} parent=1 // pred_region
      %112 = dma.done [#allocation3], 128
    $region45: #{tpu_custom_call.1} parent=1 // pred_fallthru
      _
    // Predicated region
    $region46: #{tpu_custom_call.1} parent=1 // pred_check
      _
    $region47: #{tpu_custom_call.1} parent=1 // pred_check_branch
      %114 = sbr.rel (0) target = $region49
    $region48: #{tpu_custom_call.1} parent=1 // pred_region
      %116 = dma.done [#allocation6], 128
    $region49: #{tpu_custom_call.1} parent=1 // pred_fallthru
      _
    // Predicated region
    $region50: #{tpu_custom_call.1} parent=1 // pred_check
      _
    $region51: #{tpu_custom_call.1} parent=1 // pred_check_branch
      %118 = sbr.rel (0) target = $region53
    $region52: #{tpu_custom_call.1} parent=1 // pred_region
      %120 = dma.done [#allocation6], 512
    $region53: #{tpu_custom_call.1} parent=1 // pred_fallthru
      _
    // Predicated region
    $region54: #{tpu_custom_call.1} parent=1 // pred_check
      _
    $region55: #{tpu_custom_call.1} parent=1 // pred_check_branch
      %122 = sbr.rel (0) target = $region57
    $region56: #{tpu_custom_call.1} parent=1 // pred_region
      %124 = dma.done [#allocation9], 256
    $region57: #{tpu_custom_call.1} parent=1 // pred_fallthru
      _
    // Predicated region
    $region58: #{tpu_custom_call.1} parent=1 // pred_check
      _
    $region59: #{tpu_custom_call.1} parent=1 // pred_check_branch
      %126 = sbr.rel (0) target = $region61
    $region60: #{tpu_custom_call.1} parent=1 // pred_region
      %128 = dma.done [#allocation9], 1024
    $region61: #{tpu_custom_call.1} parent=1 // pred_fallthru
      _
    // Predicated region
    $region62: #{tpu_custom_call.1} parent=1 // pred_check
      _
    $region63: #{tpu_custom_call.1} parent=1 // pred_check_branch
      %130 = sbr.rel (0) target = $region65
    $region64: #{tpu_custom_call.1} parent=1 // pred_region
      %132 = dma.done [#allocation12], 8192
    $region65: #{tpu_custom_call.1} parent=1 // pred_fallthru
      _
    // Predicated region
    $region66: #{tpu_custom_call.1} parent=1 // pred_check
      _
    $region67: #{tpu_custom_call.1} parent=1 // pred_check_branch
      %134 = sbr.rel (0) target = $region69
    $region68: #{tpu_custom_call.1} parent=1 // pred_region
      %136 = dma.done [#allocation12], 2048
    $region69: #{tpu_custom_call.1} parent=1 // pred_fallthru
      _
    %v138 = vld [vmem:[#allocation2] sm:$0xff]
    %v139 = vpack.c.bf16 %v138, %v138
    %v140 = vld [vmem:[#allocation10] sm:$0xff]
    %v141 = vld [vmem:[#allocation10 + $0x8] sm:$0xff]
    %v142 = vld [vmem:[#allocation10 + $0x10] sm:$0xff]
    %v143 = vld [vmem:[#allocation10 + $0x18] sm:$0xff]
    %v144 = vld [vmem:[#allocation10 + $0x20] sm:$0xff]
    %v145 = vld [vmem:[#allocation10 + $0x28] sm:$0xff]
    %v146 = vld [vmem:[#allocation10 + $0x30] sm:$0xff]
    %v147 = vld [vmem:[#allocation10 + $0x38] sm:$0xff]
    %v148 = vld [vmem:[%s5] sm:$0xf]
    %v150 = vperm.slane %v148, 0
    %v151 = vperm.slane %v148, 1
    %v152 = vperm.slane %v148, 2
    %v153 = vperm.slane %v148, 3
    %v166 = vunpack.c.l.b16 %v140
    %v167 = vunpack.c.h.b16 %v140
    %v168 = vunpack.c.l.b16 %v141
    %v169 = vunpack.c.h.b16 %v141
    %v170 = vunpack.c.l.b16 %v142
    %v171 = vunpack.c.h.b16 %v142
    %v172 = vunpack.c.l.b16 %v143
    %v173 = vunpack.c.h.b16 %v143
    %v174 = vunpack.c.l.b16 %v144
    %v175 = vunpack.c.h.b16 %v144
    %v176 = vunpack.c.l.b16 %v145
    %v177 = vunpack.c.h.b16 %v145
    %v178 = vunpack.c.l.b16 %v146
    %v179 = vunpack.c.h.b16 %v146
    %v180 = vunpack.c.l.b16 %v147
    %v181 = vunpack.c.h.b16 %v147
    %v182 = vpack.c.b16 %v170, %v166
    %v183 = vpack.c.b16 %v171, %v167
    %v184 = vpack.c.b16 %v172, %v168
    %v185 = vpack.c.b16 %v173, %v169
    %v186 = vpack.c.b16 %v178, %v174
    %v187 = vpack.c.b16 %v179, %v175
    %v188 = vpack.c.b16 %v180, %v176
    %v189 = vpack.c.b16 %v181, %v177
    %vm198 = vcmask 261120
    %v200 = vsel %vm198, %v139, 0
    %202 = vmatpush.bf16.msra.mxu0 0
    %203 = vmatpush.bf16.msra.mxu0 0
    %204 = vmatpush.bf16.msra.mxu0 0
    %205 = vmatpush.bf16.msra.mxu0 0
    %206 = vmatpush.bf16.msra.mxu0 0
    %207 = vmatpush.bf16.msra.mxu0 0
    %208 = vmatpush.bf16.msra.mxu0 %v186
    %209 = vmatpush.bf16.msra.mxu0 %v182
    %210 = vmatmul.bf16.gmra.mxu0 %v200
    %v211 = vpop.f32.mrf.mxu0
    %v212 = vadd.f32 %v150, %v211
    %v213 = vpop.f32.mrf.mxu0
    %214 = vdwg.mxu0
    %215 = vmatpush.bf16.msra.mxu0 0
    %216 = vmatpush.bf16.msra.mxu0 0
    %217 = vmatpush.bf16.msra.mxu0 0
    %218 = vmatpush.bf16.msra.mxu0 0
    %219 = vmatpush.bf16.msra.mxu0 0
    %220 = vmatpush.bf16.msra.mxu0 0
    %221 = vmatpush.bf16.msra.mxu0 %v187
    %222 = vmatpush.bf16.msra.mxu0 %v183
    %223 = vmatmul.bf16.gmra.mxu0 %v200
    %v224 = vpop.f32.mrf.mxu0
    %v225 = vadd.f32 %v151, %v224
    %v226 = vpop.f32.mrf.mxu0
    %227 = vdwg.mxu0
    %228 = vmatpush.bf16.msra.mxu0 0
    %229 = vmatpush.bf16.msra.mxu0 0
    %230 = vmatpush.bf16.msra.mxu0 0
    %231 = vmatpush.bf16.msra.mxu0 0
    %232 = vmatpush.bf16.msra.mxu0 0
    %233 = vmatpush.bf16.msra.mxu0 0
    %234 = vmatpush.bf16.msra.mxu0 %v188
    %235 = vmatpush.bf16.msra.mxu0 %v184
    %236 = vmatmul.bf16.gmra.mxu0 %v200
    %v237 = vpop.f32.mrf.mxu0
    %v238 = vadd.f32 %v152, %v237
    %v239 = vpop.f32.mrf.mxu0
    %240 = vdwg.mxu0
    %241 = vmatpush.bf16.msra.mxu0 0
    %242 = vmatpush.bf16.msra.mxu0 0
    %243 = vmatpush.bf16.msra.mxu0 0
    %244 = vmatpush.bf16.msra.mxu0 0
    %245 = vmatpush.bf16.msra.mxu0 0
    %246 = vmatpush.bf16.msra.mxu0 0
    %247 = vmatpush.bf16.msra.mxu0 %v189
    %248 = vmatpush.bf16.msra.mxu0 %v185
    %249 = vmatmul.bf16.gmra.mxu0 %v200
    %v250 = vpop.f32.mrf.mxu0
    %v251 = vadd.f32 %v153, %v250
    %v252 = vpop.f32.mrf.mxu0
    %253 = vdwg.mxu0
    %v254 = vmin.f32 %v212, 0.0
    %v255 = vmin.f32 %v225, 0.0
    %v256 = vmin.f32 %v238, 0.0
    %v257 = vmin.f32 %v251, 0.0
    %v258 = vmul.f32 %v254, 0.5
    %v259 = vmul.f32 %v255, 0.5
    %v260 = vmul.f32 %v256, 0.5
    %v261 = vmul.f32 %v257, 0.5
    %v262 = vtanh.pop %v258
    %v263 = vtanh.pop %v259
    %v264 = vtanh.pop %v260
    %v265 = vtanh.pop %v261
    %v266 = vmul.f32 %v254, 1.442695
    %v267 = vpow.pop %v266
    %v268 = vmul.f32 %v255, 1.442695
    %v269 = vpow.pop %v268
    %v270 = vmul.f32 %v256, 1.442695
    %v271 = vpow.pop %v270
    %v272 = vmul.f32 %v257, 1.442695
    %v273 = vpow.pop %v272
    %v274 = vadd.f32 %v267, 1.0
    %v275 = vadd.f32 %v269, 1.0
    %v276 = vadd.f32 %v271, 1.0
    %v277 = vadd.f32 %v273, 1.0
    %v278 = vmul.f32 %v262, %v274
    %v279 = vmul.f32 %v263, %v275
    %v280 = vmul.f32 %v264, %v276
    %v281 = vmul.f32 %v265, %v277
    %vm282 = vcmp.gt.f32.partialorder %v212, 0.0
    %vm283 = vcmp.gt.f32.partialorder %v225, 0.0
    %vm284 = vcmp.gt.f32.partialorder %v238, 0.0
    %vm285 = vcmp.gt.f32.partialorder %v251, 0.0
    %v286 = vsel %vm282, %v212, %v278
    %v287 = vsel %vm283, %v225, %v279
    %v288 = vsel %vm284, %v238, %v280
    %v289 = vsel %vm285, %v251, %v281
    %v290 = vld [vmem:[#allocation7] sm:$0xff]
    %v291 = vld [vmem:[#allocation7 + $0x8] sm:$0xff]
    %v292 = vld [vmem:[#allocation7 + $0x10] sm:$0xff]
    %v293 = vld [vmem:[#allocation7 + $0x18] sm:$0xff]
    %v294 = vmul.f32 %v286, %v290
    %v295 = vmul.f32 %v287, %v291
    %v296 = vmul.f32 %v288, %v292
    %v297 = vmul.f32 %v289, %v293
    %v298 = vpack.c.bf16 %v294, %v294
    %v299 = vpack.c.bf16 %v295, %v295
    %v300 = vpack.c.bf16 %v296, %v296
    %v301 = vpack.c.bf16 %v297, %v297
    %v302 = vld [vmem:[#allocation11] sm:$0xff]
    %v303 = vld [vmem:[#allocation11 + $0x8] sm:$0xff]
    %v304 = vld [vmem:[#allocation11 + $0x10] sm:$0xff]
    %v305 = vld [vmem:[#allocation11 + $0x18] sm:$0xff]
    %v306 = vld [vmem:[#allocation11 + $0x20] sm:$0xff]
    %v307 = vld [vmem:[#allocation11 + $0x28] sm:$0xff]
    %v308 = vld [vmem:[#allocation11 + $0x30] sm:$0xff]
    %v309 = vld [vmem:[#allocation11 + $0x38] sm:$0xff]
    %v310 = vld [vmem:[#allocation11 + $0x40] sm:$0xff]
    %v311 = vld [vmem:[#allocation11 + $0x48] sm:$0xff]
    %v312 = vld [vmem:[#allocation11 + $0x50] sm:$0xff]
    %v313 = vld [vmem:[#allocation11 + $0x58] sm:$0xff]
    %v314 = vld [vmem:[#allocation11 + $0x60] sm:$0xff]
    %v315 = vld [vmem:[#allocation11 + $0x68] sm:$0xff]
    %v316 = vld [vmem:[#allocation11 + $0x70] sm:$0xff]
    %v317 = vld [vmem:[#allocation11 + $0x78] sm:$0xff]
    %v318 = vld [vmem:[#allocation11 + $0x80] sm:$0xff]
    %v319 = vld [vmem:[#allocation11 + $0x88] sm:$0xff]
    %v320 = vld [vmem:[#allocation11 + $0x90] sm:$0xff]
    %v321 = vld [vmem:[#allocation11 + $0x98] sm:$0xff]
    %v322 = vld [vmem:[#allocation11 + $0xa0] sm:$0xff]
    %v323 = vld [vmem:[#allocation11 + $0xa8] sm:$0xff]
    %v324 = vld [vmem:[#allocation11 + $0xb0] sm:$0xff]
    %v325 = vld [vmem:[#allocation11 + $0xb8] sm:$0xff]
    %v326 = vld [vmem:[#allocation11 + $0xc0] sm:$0xff]
    %v327 = vld [vmem:[#allocation11 + $0xc8] sm:$0xff]
    %v328 = vld [vmem:[#allocation11 + $0xd0] sm:$0xff]
    %v329 = vld [vmem:[#allocation11 + $0xd8] sm:$0xff]
    %v330 = vld [vmem:[#allocation11 + $0xe0] sm:$0xff]
    %v331 = vld [vmem:[#allocation11 + $0xe8] sm:$0xff]
    %v332 = vld [vmem:[#allocation11 + $0xf0] sm:$0xff]
    %v333 = vld [vmem:[#allocation11 + $0xf8] sm:$0xff]
    %v334 = vld [vmem:[#allocation11 + $0x100] sm:$0xff]
    %v335 = vld [vmem:[#allocation11 + $0x108] sm:$0xff]
    %v336 = vld [vmem:[#allocation11 + $0x110] sm:$0xff]
    %v337 = vld [vmem:[#allocation11 + $0x118] sm:$0xff]
    %v338 = vld [vmem:[#allocation11 + $0x120] sm:$0xff]
    %v339 = vld [vmem:[#allocation11 + $0x128] sm:$0xff]
    %v340 = vld [vmem:[#allocation11 + $0x130] sm:$0xff]
    %v341 = vld [vmem:[#allocation11 + $0x138] sm:$0xff]
    %v342 = vld [vmem:[#allocation11 + $0x140] sm:$0xff]
    %v343 = vld [vmem:[#allocation11 + $0x148] sm:$0xff]
    %v344 = vld [vmem:[#allocation11 + $0x150] sm:$0xff]
    %v345 = vld [vmem:[#allocation11 + $0x158] sm:$0xff]
    %v346 = vld [vmem:[#allocation11 + $0x160] sm:$0xff]
    %v347 = vld [vmem:[#allocation11 + $0x168] sm:$0xff]
    %v348 = vld [vmem:[#allocation11 + $0x170] sm:$0xff]
    %v349 = vld [vmem:[#allocation11 + $0x178] sm:$0xff]
    %v350 = vld [vmem:[#allocation11 + $0x180] sm:$0xff]
    %v351 = vld [vmem:[#allocation11 + $0x188] sm:$0xff]
    %v352 = vld [vmem:[#allocation11 + $0x190] sm:$0xff]
    %v353 = vld [vmem:[#allocation11 + $0x198] sm:$0xff]
    %v354 = vld [vmem:[#allocation11 + $0x1a0] sm:$0xff]
    %v355 = vld [vmem:[#allocation11 + $0x1a8] sm:$0xff]
    %v356 = vld [vmem:[#allocation11 + $0x1b0] sm:$0xff]
    %v357 = vld [vmem:[#allocation11 + $0x1b8] sm:$0xff]
    %v358 = vld [vmem:[#allocation11 + $0x1c0] sm:$0xff]
    %v359 = vld [vmem:[#allocation11 + $0x1c8] sm:$0xff]
    %v360 = vld [vmem:[#allocation11 + $0x1d0] sm:$0xff]
    %v361 = vld [vmem:[#allocation11 + $0x1d8] sm:$0xff]
    %v362 = vld [vmem:[#allocation11 + $0x1e0] sm:$0xff]
    %v363 = vld [vmem:[#allocation11 + $0x1e8] sm:$0xff]
    %v364 = vld [vmem:[#allocation11 + $0x1f0] sm:$0xff]
    %v365 = vld [vmem:[#allocation11 + $0x1f8] sm:$0xff]
    %v366 = vld [vmem:[%s7] sm:$0x3]
    %v368 = vperm.slane %v366, 0
    %v369 = vperm.slane %v366, 1
    %v436 = vunpack.c.l.b16 %v302
    %v437 = vunpack.c.h.b16 %v302
    %v438 = vunpack.c.l.b16 %v303
    %v439 = vunpack.c.h.b16 %v303
    %v440 = vunpack.c.l.b16 %v304
    %v441 = vunpack.c.h.b16 %v304
    %v442 = vunpack.c.l.b16 %v305
    %v443 = vunpack.c.h.b16 %v305
    %v444 = vunpack.c.l.b16 %v306
    %v445 = vunpack.c.h.b16 %v306
    %v446 = vunpack.c.l.b16 %v307
    %v447 = vunpack.c.h.b16 %v307
    %v448 = vunpack.c.l.b16 %v308
    %v449 = vunpack.c.h.b16 %v308
    %v450 = vunpack.c.l.b16 %v309
    %v451 = vunpack.c.h.b16 %v309
    %v452 = vunpack.c.l.b16 %v310
    %v453 = vunpack.c.h.b16 %v310
    %v454 = vunpack.c.l.b16 %v311
    %v455 = vunpack.c.h.b16 %v311
    %v456 = vunpack.c.l.b16 %v312
    %v457 = vunpack.c.h.b16 %v312
    %v458 = vunpack.c.l.b16 %v313
    %v459 = vunpack.c.h.b16 %v313
    %v460 = vunpack.c.l.b16 %v314
    %v461 = vunpack.c.h.b16 %v314
    %v462 = vunpack.c.l.b16 %v315
    %v463 = vunpack.c.h.b16 %v315
    %v464 = vunpack.c.l.b16 %v316
    %v465 = vunpack.c.h.b16 %v316
    %v466 = vunpack.c.l.b16 %v317
    %v467 = vunpack.c.h.b16 %v317
    %v468 = vunpack.c.l.b16 %v318
    %v469 = vunpack.c.h.b16 %v318
    %v470 = vunpack.c.l.b16 %v319
    %v471 = vunpack.c.h.b16 %v319
    %v472 = vunpack.c.l.b16 %v320
    %v473 = vunpack.c.h.b16 %v320
    %v474 = vunpack.c.l.b16 %v321
    %v475 = vunpack.c.h.b16 %v321
    %v476 = vunpack.c.l.b16 %v322
    %v477 = vunpack.c.h.b16 %v322
    %v478 = vunpack.c.l.b16 %v323
    %v479 = vunpack.c.h.b16 %v323
    %v480 = vunpack.c.l.b16 %v324
    %v481 = vunpack.c.h.b16 %v324
    %v482 = vunpack.c.l.b16 %v325
    %v483 = vunpack.c.h.b16 %v325
    %v484 = vunpack.c.l.b16 %v326
    %v485 = vunpack.c.h.b16 %v326
    %v486 = vunpack.c.l.b16 %v327
    %v487 = vunpack.c.h.b16 %v327
    %v488 = vunpack.c.l.b16 %v328
    %v489 = vunpack.c.h.b16 %v328
    %v490 = vunpack.c.l.b16 %v329
    %v491 = vunpack.c.h.b16 %v329
    %v492 = vunpack.c.l.b16 %v330
    %v493 = vunpack.c.h.b16 %v330
    %v494 = vunpack.c.l.b16 %v331
    %v495 = vunpack.c.h.b16 %v331
    %v496 = vunpack.c.l.b16 %v332
    %v497 = vunpack.c.h.b16 %v332
    %v498 = vunpack.c.l.b16 %v333
    %v499 = vunpack.c.h.b16 %v333
    %v500 = vunpack.c.l.b16 %v334
    %v501 = vunpack.c.h.b16 %v334
    %v502 = vunpack.c.l.b16 %v335
    %v503 = vunpack.c.h.b16 %v335
    %v504 = vunpack.c.l.b16 %v336
    %v505 = vunpack.c.h.b16 %v336
    %v506 = vunpack.c.l.b16 %v337
    %v507 = vunpack.c.h.b16 %v337
    %v508 = vunpack.c.l.b16 %v338
    %v509 = vunpack.c.h.b16 %v338
    %v510 = vunpack.c.l.b16 %v339
    %v511 = vunpack.c.h.b16 %v339
    %v512 = vunpack.c.l.b16 %v340
    %v513 = vunpack.c.h.b16 %v340
    %v514 = vunpack.c.l.b16 %v341
    %v515 = vunpack.c.h.b16 %v341
    %v516 = vunpack.c.l.b16 %v342
    %v517 = vunpack.c.h.b16 %v342
    %v518 = vunpack.c.l.b16 %v343
    %v519 = vunpack.c.h.b16 %v343
    %v520 = vunpack.c.l.b16 %v344
    %v521 = vunpack.c.h.b16 %v344
    %v522 = vunpack.c.l.b16 %v345
    %v523 = vunpack.c.h.b16 %v345
    %v524 = vunpack.c.l.b16 %v346
    %v525 = vunpack.c.h.b16 %v346
    %v526 = vunpack.c.l.b16 %v347
    %v527 = vunpack.c.h.b16 %v347
    %v528 = vunpack.c.l.b16 %v348
    %v529 = vunpack.c.h.b16 %v348
    %v530 = vunpack.c.l.b16 %v349
    %v531 = vunpack.c.h.b16 %v349
    %v532 = vunpack.c.l.b16 %v350
    %v533 = vunpack.c.h.b16 %v350
    %v534 = vunpack.c.l.b16 %v351
    %v535 = vunpack.c.h.b16 %v351
    %v536 = vunpack.c.l.b16 %v352
    %v537 = vunpack.c.h.b16 %v352
    %v538 = vunpack.c.l.b16 %v353
    %v539 = vunpack.c.h.b16 %v353
    %v540 = vunpack.c.l.b16 %v354
    %v541 = vunpack.c.h.b16 %v354
    %v542 = vunpack.c.l.b16 %v355
    %v543 = vunpack.c.h.b16 %v355
    %v544 = vunpack.c.l.b16 %v356
    %v545 = vunpack.c.h.b16 %v356
    %v546 = vunpack.c.l.b16 %v357
    %v547 = vunpack.c.h.b16 %v357
    %v548 = vunpack.c.l.b16 %v358
    %v549 = vunpack.c.h.b16 %v358
    %v550 = vunpack.c.l.b16 %v359
    %v551 = vunpack.c.h.b16 %v359
    %v552 = vunpack.c.l.b16 %v360
    %v553 = vunpack.c.h.b16 %v360
    %v554 = vunpack.c.l.b16 %v361
    %v555 = vunpack.c.h.b16 %v361
    %v556 = vunpack.c.l.b16 %v362
    %v557 = vunpack.c.h.b16 %v362
    %v558 = vunpack.c.l.b16 %v363
    %v559 = vunpack.c.h.b16 %v363
    %v560 = vunpack.c.l.b16 %v364
    %v561 = vunpack.c.h.b16 %v364
    %v562 = vunpack.c.l.b16 %v365
    %v563 = vunpack.c.h.b16 %v365
    %v564 = vpack.c.b16 %v438, %v436
    %v565 = vpack.c.b16 %v439, %v437
    %v566 = vpack.c.b16 %v442, %v440
    %v567 = vpack.c.b16 %v443, %v441
    %v568 = vpack.c.b16 %v446, %v444
    %v569 = vpack.c.b16 %v447, %v445
    %v570 = vpack.c.b16 %v450, %v448
    %v571 = vpack.c.b16 %v451, %v449
    %v572 = vpack.c.b16 %v454, %v452
    %v573 = vpack.c.b16 %v455, %v453
    %v574 = vpack.c.b16 %v458, %v456
    %v575 = vpack.c.b16 %v459, %v457
    %v576 = vpack.c.b16 %v462, %v460
    %v577 = vpack.c.b16 %v463, %v461
    %v578 = vpack.c.b16 %v466, %v464
    %v579 = vpack.c.b16 %v467, %v465
    %v580 = vpack.c.b16 %v470, %v468
    %v581 = vpack.c.b16 %v471, %v469
    %v582 = vpack.c.b16 %v474, %v472
    %v583 = vpack.c.b16 %v475, %v473
    %v584 = vpack.c.b16 %v478, %v476
    %v585 = vpack.c.b16 %v479, %v477
    %v586 = vpack.c.b16 %v482, %v480
    %v587 = vpack.c.b16 %v483, %v481
    %v588 = vpack.c.b16 %v486, %v484
    %v589 = vpack.c.b16 %v487, %v485
    %v590 = vpack.c.b16 %v490, %v488
    %v591 = vpack.c.b16 %v491, %v489
    %v592 = vpack.c.b16 %v494, %v492
    %v593 = vpack.c.b16 %v495, %v493
    %v594 = vpack.c.b16 %v498, %v496
    %v595 = vpack.c.b16 %v499, %v497
    %v596 = vpack.c.b16 %v502, %v500
    %v597 = vpack.c.b16 %v503, %v501
    %v598 = vpack.c.b16 %v506, %v504
    %v599 = vpack.c.b16 %v507, %v505
    %v600 = vpack.c.b16 %v510, %v508
    %v601 = vpack.c.b16 %v511, %v509
    %v602 = vpack.c.b16 %v514, %v512
    %v603 = vpack.c.b16 %v515, %v513
    %v604 = vpack.c.b16 %v518, %v516
    %v605 = vpack.c.b16 %v519, %v517
    %v606 = vpack.c.b16 %v522, %v520
    %v607 = vpack.c.b16 %v523, %v521
    %v608 = vpack.c.b16 %v526, %v524
    %v609 = vpack.c.b16 %v527, %v525
    %v610 = vpack.c.b16 %v530, %v528
    %v611 = vpack.c.b16 %v531, %v529
    %v612 = vpack.c.b16 %v534, %v532
    %v613 = vpack.c.b16 %v535, %v533
    %v614 = vpack.c.b16 %v538, %v536
    %v615 = vpack.c.b16 %v539, %v537
    %v616 = vpack.c.b16 %v542, %v540
    %v617 = vpack.c.b16 %v543, %v541
    %v618 = vpack.c.b16 %v546, %v544
    %v619 = vpack.c.b16 %v547, %v545
    %v620 = vpack.c.b16 %v550, %v548
    %v621 = vpack.c.b16 %v551, %v549
    %v622 = vpack.c.b16 %v554, %v552
    %v623 = vpack.c.b16 %v555, %v553
    %v624 = vpack.c.b16 %v558, %v556
    %v625 = vpack.c.b16 %v559, %v557
    %v626 = vpack.c.b16 %v562, %v560
    %v627 = vpack.c.b16 %v563, %v561
    %692 = vmatpush.bf16.msra.mxu0 %v578
    %693 = vmatpush.bf16.msra.mxu0 %v576
    %694 = vmatpush.bf16.msra.mxu0 %v574
    %695 = vmatpush.bf16.msra.mxu0 %v572
    %696 = vmatpush.bf16.msra.mxu0 %v570
    %697 = vmatpush.bf16.msra.mxu0 %v568
    %698 = vmatpush.bf16.msra.mxu0 %v566
    %699 = vmatpush.bf16.msra.mxu0 %v564
    %700 = vmatmul.bf16.gmra.mxu0 %v298
    %v701 = vpop.f32.mrf.mxu0
    %v702 = vadd.f32 %v368, %v701
    %v703 = vpop.f32.mrf.mxu0
    %704 = vdwg.mxu0
    %705 = vmatpush.bf16.msra.mxu0 %v594
    %706 = vmatpush.bf16.msra.mxu0 %v592
    %707 = vmatpush.bf16.msra.mxu0 %v590
    %708 = vmatpush.bf16.msra.mxu0 %v588
    %709 = vmatpush.bf16.msra.mxu0 %v586
    %710 = vmatpush.bf16.msra.mxu0 %v584
    %711 = vmatpush.bf16.msra.mxu0 %v582
    %712 = vmatpush.bf16.msra.mxu0 %v580
    %713 = vmatmul.bf16.gmra.mxu0 %v299
    %v714 = vpop.f32.mrf.mxu0
    %v715 = vadd.f32 %v702, %v714
    %v716 = vpop.f32.mrf.mxu0
    %717 = vdwg.mxu0
    %718 = vmatpush.bf16.msra.mxu0 %v610
    %719 = vmatpush.bf16.msra.mxu0 %v608
    %720 = vmatpush.bf16.msra.mxu0 %v606
    %721 = vmatpush.bf16.msra.mxu0 %v604
    %722 = vmatpush.bf16.msra.mxu0 %v602
    %723 = vmatpush.bf16.msra.mxu0 %v600
    %724 = vmatpush.bf16.msra.mxu0 %v598
    %725 = vmatpush.bf16.msra.mxu0 %v596
    %726 = vmatmul.bf16.gmra.mxu0 %v300
    %v727 = vpop.f32.mrf.mxu0
    %v728 = vadd.f32 %v715, %v727
    %v729 = vpop.f32.mrf.mxu0
    %730 = vdwg.mxu0
    %731 = vmatpush.bf16.msra.mxu0 %v626
    %732 = vmatpush.bf16.msra.mxu0 %v624
    %733 = vmatpush.bf16.msra.mxu0 %v622
    %734 = vmatpush.bf16.msra.mxu0 %v620
    %735 = vmatpush.bf16.msra.mxu0 %v618
    %736 = vmatpush.bf16.msra.mxu0 %v616
    %737 = vmatpush.bf16.msra.mxu0 %v614
    %738 = vmatpush.bf16.msra.mxu0 %v612
    %739 = vmatmul.bf16.gmra.mxu0 %v301
    %v740 = vpop.f32.mrf.mxu0
    %v741 = vadd.f32 %v728, %v740
    %v742 = vpop.f32.mrf.mxu0
    %743 = vdwg.mxu0
    %744 = vmatpush.bf16.msra.mxu0 %v579
    %745 = vmatpush.bf16.msra.mxu0 %v577
    %746 = vmatpush.bf16.msra.mxu0 %v575
    %747 = vmatpush.bf16.msra.mxu0 %v573
    %748 = vmatpush.bf16.msra.mxu0 %v571
    %749 = vmatpush.bf16.msra.mxu0 %v569
    %750 = vmatpush.bf16.msra.mxu0 %v567
    %751 = vmatpush.bf16.msra.mxu0 %v565
    %752 = vmatmul.bf16.gmra.mxu0 %v298
    %v753 = vpop.f32.mrf.mxu0
    %v754 = vadd.f32 %v369, %v753
    %v755 = vpop.f32.mrf.mxu0
    %756 = vdwg.mxu0
    %757 = vmatpush.bf16.msra.mxu0 %v595
    %758 = vmatpush.bf16.msra.mxu0 %v593
    %759 = vmatpush.bf16.msra.mxu0 %v591
    %760 = vmatpush.bf16.msra.mxu0 %v589
    %761 = vmatpush.bf16.msra.mxu0 %v587
    %762 = vmatpush.bf16.msra.mxu0 %v585
    %763 = vmatpush.bf16.msra.mxu0 %v583
    %764 = vmatpush.bf16.msra.mxu0 %v581
    %765 = vmatmul.bf16.gmra.mxu0 %v299
    %v766 = vpop.f32.mrf.mxu0
    %v767 = vadd.f32 %v754, %v766
    %v768 = vpop.f32.mrf.mxu0
    %769 = vdwg.mxu0
    %770 = vmatpush.bf16.msra.mxu0 %v611
    %771 = vmatpush.bf16.msra.mxu0 %v609
    %772 = vmatpush.bf16.msra.mxu0 %v607
    %773 = vmatpush.bf16.msra.mxu0 %v605
    %774 = vmatpush.bf16.msra.mxu0 %v603
    %775 = vmatpush.bf16.msra.mxu0 %v601
    %776 = vmatpush.bf16.msra.mxu0 %v599
    %777 = vmatpush.bf16.msra.mxu0 %v597
    %778 = vmatmul.bf16.gmra.mxu0 %v300
    %v779 = vpop.f32.mrf.mxu0
    %v780 = vadd.f32 %v767, %v779
    %v781 = vpop.f32.mrf.mxu0
    %782 = vdwg.mxu0
    %783 = vmatpush.bf16.msra.mxu0 %v627
    %784 = vmatpush.bf16.msra.mxu0 %v625
    %785 = vmatpush.bf16.msra.mxu0 %v623
    %786 = vmatpush.bf16.msra.mxu0 %v621
    %787 = vmatpush.bf16.msra.mxu0 %v619
    %788 = vmatpush.bf16.msra.mxu0 %v617
    %789 = vmatpush.bf16.msra.mxu0 %v615
    %790 = vmatpush.bf16.msra.mxu0 %v613
    %791 = vmatmul.bf16.gmra.mxu0 %v301
    %v792 = vpop.f32.mrf.mxu0
    %v793 = vadd.f32 %v780, %v792
    %v794 = vpop.f32.mrf.mxu0
    %795 = vdwg.mxu0
    %v796 = vmin.f32 %v741, 0.0
    %v797 = vmin.f32 %v793, 0.0
    %v798 = vmul.f32 %v796, 0.5
    %v799 = vmul.f32 %v797, 0.5
    %v800 = vtanh.pop %v798
    %v801 = vtanh.pop %v799
    %v802 = vmul.f32 %v796, 1.442695
    %v803 = vpow.pop %v802
    %v804 = vmul.f32 %v797, 1.442695
    %v805 = vpow.pop %v804
    %v806 = vadd.f32 %v803, 1.0
    %v807 = vadd.f32 %v805, 1.0
    %v808 = vmul.f32 %v800, %v806
    %v809 = vmul.f32 %v801, %v807
    %vm810 = vcmp.gt.f32.partialorder %v741, 0.0
    %vm811 = vcmp.gt.f32.partialorder %v793, 0.0
    %v812 = vsel %vm810, %v741, %v808
    %v813 = vsel %vm811, %v793, %v809
    %v814 = vld [vmem:[#allocation8] sm:$0xff]
    %v815 = vld [vmem:[#allocation8 + $0x8] sm:$0xff]
    %v816 = vmul.f32 %v812, %v814
    %v817 = vmul.f32 %v813, %v815
    %v818 = vpack.c.bf16 %v816, %v816
    %v819 = vpack.c.bf16 %v817, %v817
    %v820 = vld [vmem:[#allocation13] sm:$0xf]
    %v821 = vld [vmem:[#allocation13 + $0x4] sm:$0xf]
    %v822 = vld [vmem:[#allocation13 + $0x8] sm:$0xf]
    %v823 = vld [vmem:[#allocation13 + $0xc] sm:$0xf]
    %v824 = vld [vmem:[#allocation13 + $0x10] sm:$0xf]
    %v825 = vld [vmem:[#allocation13 + $0x14] sm:$0xf]
    %v826 = vld [vmem:[#allocation13 + $0x18] sm:$0xf]
    %v827 = vld [vmem:[#allocation13 + $0x1c] sm:$0xf]
    %v828 = vld [vmem:[#allocation13 + $0x20] sm:$0xf]
    %v829 = vld [vmem:[#allocation13 + $0x24] sm:$0xf]
    %v830 = vld [vmem:[#allocation13 + $0x28] sm:$0xf]
    %v831 = vld [vmem:[#allocation13 + $0x2c] sm:$0xf]
    %v832 = vld [vmem:[#allocation13 + $0x30] sm:$0xf]
    %v833 = vld [vmem:[#allocation13 + $0x34] sm:$0xf]
    %v834 = vld [vmem:[#allocation13 + $0x38] sm:$0xf]
    %v835 = vld [vmem:[#allocation13 + $0x3c] sm:$0xf]
    %v836 = vld [vmem:[#allocation13 + $0x40] sm:$0xf]
    %v837 = vld [vmem:[#allocation13 + $0x44] sm:$0xf]
    %v838 = vld [vmem:[#allocation13 + $0x48] sm:$0xf]
    %v839 = vld [vmem:[#allocation13 + $0x4c] sm:$0xf]
    %v840 = vld [vmem:[#allocation13 + $0x50] sm:$0xf]
    %v841 = vld [vmem:[#allocation13 + $0x54] sm:$0xf]
    %v842 = vld [vmem:[#allocation13 + $0x58] sm:$0xf]
    %v843 = vld [vmem:[#allocation13 + $0x5c] sm:$0xf]
    %v844 = vld [vmem:[#allocation13 + $0x60] sm:$0xf]
    %v845 = vld [vmem:[#allocation13 + $0x64] sm:$0xf]
    %v846 = vld [vmem:[#allocation13 + $0x68] sm:$0xf]
    %v847 = vld [vmem:[#allocation13 + $0x6c] sm:$0xf]
    %v848 = vld [vmem:[#allocation13 + $0x70] sm:$0xf]
    %v849 = vld [vmem:[#allocation13 + $0x74] sm:$0xf]
    %v850 = vld [vmem:[#allocation13 + $0x78] sm:$0xf]
    %v851 = vld [vmem:[#allocation13 + $0x7c] sm:$0xf]
    %v852 = vld [vmem:[%s9] sm:$0x1]
    %v854 = vperm.slane %v852, 0
    %v888 = vunpack.c.l.b16 %v820
    %v889 = vunpack.c.l.b16 %v821
    %v890 = vunpack.c.l.b16 %v822
    %v891 = vunpack.c.l.b16 %v823
    %v892 = vunpack.c.l.b16 %v824
    %v893 = vunpack.c.l.b16 %v825
    %v894 = vunpack.c.l.b16 %v826
    %v895 = vunpack.c.l.b16 %v827
    %v896 = vunpack.c.l.b16 %v828
    %v897 = vunpack.c.l.b16 %v829
    %v898 = vunpack.c.l.b16 %v830
    %v899 = vunpack.c.l.b16 %v831
    %v900 = vunpack.c.l.b16 %v832
    %v901 = vunpack.c.l.b16 %v833
    %v902 = vunpack.c.l.b16 %v834
    %v903 = vunpack.c.l.b16 %v835
    %v904 = vunpack.c.l.b16 %v836
    %v905 = vunpack.c.l.b16 %v837
    %v906 = vunpack.c.l.b16 %v838
    %v907 = vunpack.c.l.b16 %v839
    %v908 = vunpack.c.l.b16 %v840
    %v909 = vunpack.c.l.b16 %v841
    %v910 = vunpack.c.l.b16 %v842
    %v911 = vunpack.c.l.b16 %v843
    %v912 = vunpack.c.l.b16 %v844
    %v913 = vunpack.c.l.b16 %v845
    %v914 = vunpack.c.l.b16 %v846
    %v915 = vunpack.c.l.b16 %v847
    %v916 = vunpack.c.l.b16 %v848
    %v917 = vunpack.c.l.b16 %v849
    %v918 = vunpack.c.l.b16 %v850
    %v919 = vunpack.c.l.b16 %v851
    %v920 = vpack.c.b16 %v889, %v888
    %v921 = vpack.c.b16 %v891, %v890
    %v922 = vpack.c.b16 %v893, %v892
    %v923 = vpack.c.b16 %v895, %v894
    %v924 = vpack.c.b16 %v897, %v896
    %v925 = vpack.c.b16 %v899, %v898
    %v926 = vpack.c.b16 %v901, %v900
    %v927 = vpack.c.b16 %v903, %v902
    %v928 = vpack.c.b16 %v905, %v904
    %v929 = vpack.c.b16 %v907, %v906
    %v930 = vpack.c.b16 %v909, %v908
    %v931 = vpack.c.b16 %v911, %v910
    %v932 = vpack.c.b16 %v913, %v912
    %v933 = vpack.c.b16 %v915, %v914
    %v934 = vpack.c.b16 %v917, %v916
    %v935 = vpack.c.b16 %v919, %v918
    %952 = vmatpush.bf16.msra.mxu0 %v927
    %953 = vmatpush.bf16.msra.mxu0 %v926
    %954 = vmatpush.bf16.msra.mxu0 %v925
    %955 = vmatpush.bf16.msra.mxu0 %v924
    %956 = vmatpush.bf16.msra.mxu0 %v923
    %957 = vmatpush.bf16.msra.mxu0 %v922
    %958 = vmatpush.bf16.msra.mxu0 %v921
    %959 = vmatpush.bf16.msra.mxu0 %v920
    %960 = vmatmul.bf16.gmra.mxu0 %v818
    %v961 = vpop.f32.mrf.mxu0
    %v962 = vadd.f32 %v854, %v961
    %v963 = vpop.f32.mrf.mxu0
    %964 = vdwg.mxu0
    %965 = vmatpush.bf16.msra.mxu0 %v935
    %966 = vmatpush.bf16.msra.mxu0 %v934
    %967 = vmatpush.bf16.msra.mxu0 %v933
    %968 = vmatpush.bf16.msra.mxu0 %v932
    %969 = vmatpush.bf16.msra.mxu0 %v931
    %970 = vmatpush.bf16.msra.mxu0 %v930
    %971 = vmatpush.bf16.msra.mxu0 %v929
    %972 = vmatpush.bf16.msra.mxu0 %v928
    %973 = vmatmul.bf16.gmra.mxu0 %v819
    %v974 = vpop.f32.mrf.mxu0
    %v975 = vadd.f32 %v962, %v974
    %v976 = vpop.f32.mrf.mxu0
    %977 = vdwg.mxu0
    %v978 = vlaneseq
    %v979 = vand.u32 %v978, 127
    %vm980 = vcmp.lt.s32.totalorder %v979, 16
    %v981 = vld [vmem:[#allocation5] sm:$0xff]
    %vm982 = vcmp.ne.s32.totalorder %v981, 0
    %v983 = vsel %vm982, %v975, -999999.0
    %v984 = vsel %vm980, %v983, -inf
    %985 = vmax.xlane.f32.xlu0 %v984
    %v986 = vpop.xlane.xlu0 %985
    %v987 = vsub.f32 %v984, %v986
    %v988 = vmul.f32 %v987, 1.442695
    %v989 = vpow.pop %v988
    %990 = vadd.xlane.f32.xlu0 %v989
    %v991 = vpop.xlane.xlu0 %990
    %v992 = vrcp.pop %v991
    %v993 = vmul.f32 %v989, %v992
    %vm994 = vcmp.eq.s32.totalorder %v979, 16
    %v995 = vsel %vm994, %v975, %v993
    %996 = vst [vmem:[#allocation14] sm:$0xff] %v995
    // Predicated region
    $region70: #{tpu_custom_call.1} parent=1 // pred_check
      _
    $region71: #{tpu_custom_call.1} parent=1 // pred_check_branch
      %998 = sbr.rel (0) target = $region73
    $region72: #{tpu_custom_call.1} parent=1 // pred_region
      %1000 = vsyncadd [#allocation4], 0
      %s1002 = sshll.u32 [#allocation14], 4
      %s1003 = int_to_ptr.vmem [resolvable:$true] %s1002
      %s1004 = sshll.u32 %s10, 4
      %s1005 = int_to_ptr.hbm [resolvable:$true] %s1004
      %1007 = dma.vmem_to_hbm [thread:$0]  %s1003, 128, %s1005, [#allocation4]
    $region73: #{tpu_custom_call.1} parent=1 // pred_fallthru
      _
    // Predicated region
    $region74: #{tpu_custom_call.1} parent=1 // pred_check
      _
    $region75: #{tpu_custom_call.1} parent=1 // pred_check_branch
      %1009 = sbr.rel (0) target = $region77
    $region76: #{tpu_custom_call.1} parent=1 // pred_region
      %1011 = dma.done [#allocation4], 128
    $region77: #{tpu_custom_call.1} parent=1 // pred_fallthru
      _
    %1012 = vsyncpa [#allocation3], 1
    %1013 = vsyncpa [#allocation6], 1
    %1014 = vsyncpa [#allocation9], 1
    %1015 = vsyncpa [#allocation12], 1
    %1016 = vsyncpa [#allocation4], 1

</llo_original>
